<compile_context>
chip_gen: v6e
topology: v6e:2x2x1
jax: 0.10.0
libtpu: 0.0.40
codegen_flags: <defaults>
</compile_context>

<pallas_src>
import math
import numpy as np
import jax
import jax.numpy as jnp
from jax.experimental import pallas as pl
from jax.experimental.pallas import tpu as pltpu

DEGREE = 2
NVARS = 4
# pairwise ger(...) blocks in the exact PyTorch cat() order
PAIRS = [(0, 1), (0, 2), (0, 3), (1, 2), (1, 3), (2, 3)]
NFEAT = NVARS * DEGREE + len(PAIRS) * DEGREE * DEGREE   # 32 for degree=2
FPAD = 128                                              # lane-pad feature axis
NROWS = NVARS * DEGREE                                  # 8 == sublane count


def build_exponent_table():
    """(4, 32) int table: exps[v, f] = exponent of variable v in feature f."""
    rows = []
    for v in range(NVARS):                    # x1_pow .. x4_pow
        for k in range(1, DEGREE + 1):
            e = [0] * NVARS
            e[v] = k
            rows.append(e)
    for (a, b) in PAIRS:                      # ger(...).flatten(), row-major
        for i in range(1, DEGREE + 1):
            for j in range(1, DEGREE + 1):
                e = [0] * NVARS
                e[a] += i
                e[b] += j
                rows.append(e)
    table = np.array(rows, dtype=np.int32).T  # (NVARS, NFEAT)
    assert table.shape == (NVARS, NFEAT)
    return table


def build_mask_table():
    """(8, 128) f32: row (v*DEGREE + k-1), lane f = 1.0 iff exps[v,f] >= k."""
    exps = build_exponent_table()
    mask = np.zeros((NROWS, FPAD), np.float32)
    for v in range(NVARS):
        for k in range(1, DEGREE + 1):
            mask[v * DEGREE + (k - 1), :NFEAT] = (exps[v] >= k).astype(np.float32)
    return mask


def poly_kernel(x_ref, c_ref, out_ref):
    # x_ref:  VMEM (8, 1)      f32 — row (v*DEGREE + j) holds x_{v+1}
    # c_ref:  VMEM (2, 8, 128) f32 — plane 0: exponent-threshold masks,
    #                                plane 1: row 0 = fc1 weight (zero-padded),
    #                                         rows 1..7 = 0
    # out_ref: SMEM (1, 1)     f32 — scalar output
    xm1 = jnp.broadcast_to(x_ref[...], (NROWS, FPAD)) - 1.0
    # factor[r, f] = x_v if exps[v, f] >= k else 1   (FMA form, no compares)
    f = 1.0 + c_ref[0] * xm1
    # product across all 8 sublanes -> every row holds the full monomial value
    f = f * pltpu.roll(f, 4, axis=0)
    f = f * pltpu.roll(f, 2, axis=0)
    f = f * pltpu.roll(f, 1, axis=0)
    # weight plane is nonzero only in row 0 (and only in the first 32 lanes),
    # so a full-tile multiply + sum is exactly the fc1 dot product.
    out_ref[0, 0] = jnp.sum(f * c_ref[1])


def make_fourvariate_poly(weight):
    """Bake the fc1 weight + mask constants once; return a jitted x -> (1,) fn."""
    const = np.zeros((2, NROWS, FPAD), np.float32)
    const[0] = build_mask_table()
    const[1, 0, :NFEAT] = np.asarray(jax.device_get(weight)).reshape(-1)[:NFEAT]
    const_j = jnp.asarray(const)

    kernel_call = pl.pallas_call(
        poly_kernel,
        out_shape=jax.ShapeDtypeStruct((1, 1), jnp.float32),
        in_specs=[
            pl.BlockSpec(memory_space=pltpu.MemorySpace.VMEM),   # x (8,1)
            pl.BlockSpec(memory_space=pltpu.MemorySpace.VMEM),   # masks+weight
        ],
        out_specs=pl.BlockSpec(memory_space=pltpu.MemorySpace.SMEM),
    )

    @jax.jit
    def fwd(x):
        # x: (4, 1) f32 — matches the torch x[:, 0][k] access
        x8 = jnp.repeat(x[:, 0].astype(jnp.float32), DEGREE).reshape(NROWS, 1)
        return kernel_call(x8, const_j).reshape(1)

    return fwd


def fourvariate_poly_ref(x, weight):
    """Plain-JAX replica of the PyTorch forward (integer-exponent powers)."""
    v = x[:, 0]
    p = [jnp.stack([v[i] ** (k + 1) for k in range(DEGREE)]) for i in range(NVARS)]

    def ger(a, b):
        return jnp.outer(a, b).reshape(-1)

    feat = jnp.concatenate([
        p[0], p[1], p[2], p[3],
        ger(p[0], p[1]), ger(p[0], p[2]), ger(p[0], p[3]),
        ger(p[1], p[2]), ger(p[1], p[3]), ger(p[2], p[3]),
    ])
    return (feat @ weight[0]).reshape(1)


if __name__ == "__main__":
    key = jax.random.PRNGKey(0)
    kx, kw = jax.random.split(key)

    # x: (4, 1) — four scalar inputs, as implied by x[:, 0][0..3]
    x = jax.random.normal(kx, (4, 1), dtype=jnp.float32)

    # fc1: nn.Linear(32, 1, bias=False) — deterministic uniform init like PyTorch
    bound = 1.0 / math.sqrt(NFEAT)
    weight = jax.random.uniform(kw, (1, NFEAT), dtype=jnp.float32,
                                minval=-bound, maxval=bound)

    fwd = make_fourvariate_poly(weight)
    out = jax.block_until_ready(fwd(x))

    ref = fourvariate_poly_ref(x, weight)
    assert out.shape == (1,)
    np.testing.assert_allclose(np.asarray(out), np.asarray(ref), rtol=1e-5, atol=1e-5)

    print("KERNEL_OK")
</pallas_src>

<mosaic_0001>
module attributes {stable_mosaic.version = 11 : i64} {
  func.func @poly_kernel(%arg0: memref<8x1xf32, #tpu.memory_space<vmem>>, %arg1: memref<2x8x128xf32, #tpu.memory_space<vmem>>, %arg2: memref<1x1xf32, #tpu.memory_space<smem>>) attributes {dimension_semantics = [], scalar_prefetch = 0 : i64, scratch_operands = 0 : i64, tpu.core_type = #tpu.core_type<tc>} {
    %c0 = arith.constant 0 : index
    %c0_0 = arith.constant 0 : index
    %0 = vector.load %arg0[%c0, %c0_0] : memref<8x1xf32, #tpu.memory_space<vmem>>, vector<8x1xf32>
    %1 = vector.shape_cast %0 : vector<8x1xf32> to vector<8x1xf32>
    %2 = vector.broadcast %1 : vector<8x1xf32> to vector<8x128xf32>
    %cst = arith.constant 1.000000e+00 : f32
    %3 = vector.broadcast %cst : f32 to vector<8x128xf32>
    %4 = arith.subf %2, %3 : vector<8x128xf32>
    %c0_1 = arith.constant 0 : index
    %c0_2 = arith.constant 0 : index
    %c0_3 = arith.constant 0 : index
    %5 = vector.load %arg1[%c0_1, %c0_2, %c0_3] : memref<2x8x128xf32, #tpu.memory_space<vmem>>, vector<1x8x128xf32>
    %6 = vector.shape_cast %5 : vector<1x8x128xf32> to vector<8x128xf32>
    %7 = arith.mulf %6, %4 : vector<8x128xf32>
    %cst_4 = arith.constant 1.000000e+00 : f32
    %8 = vector.broadcast %cst_4 : f32 to vector<8x128xf32>
    %9 = arith.addf %8, %7 : vector<8x128xf32>
    %c4_i32 = arith.constant 4 : i32
    %10 = tpu.dynamic_rotate %9 by %c4_i32 dim 0 : vector<8x128xf32>, i32 -> vector<8x128xf32>
    %11 = arith.mulf %9, %10 : vector<8x128xf32>
    %c2_i32 = arith.constant 2 : i32
    %12 = tpu.dynamic_rotate %11 by %c2_i32 dim 0 : vector<8x128xf32>, i32 -> vector<8x128xf32>
    %13 = arith.mulf %11, %12 : vector<8x128xf32>
    %c1_i32 = arith.constant 1 : i32
    %14 = tpu.dynamic_rotate %13 by %c1_i32 dim 0 : vector<8x128xf32>, i32 -> vector<8x128xf32>
    %15 = arith.mulf %13, %14 : vector<8x128xf32>
    %c1 = arith.constant 1 : index
    %c0_5 = arith.constant 0 : index
    %c0_6 = arith.constant 0 : index
    %16 = vector.load %arg1[%c1, %c0_5, %c0_6] : memref<2x8x128xf32, #tpu.memory_space<vmem>>, vector<1x8x128xf32>
    %17 = vector.shape_cast %16 : vector<1x8x128xf32> to vector<8x128xf32>
    %18 = arith.mulf %15, %17 : vector<8x128xf32>
    %19 = vector.shape_cast %18 : vector<8x128xf32> to vector<1x8x128xf32>
    %cst_7 = arith.constant dense<0.000000e+00> : vector<1xf32>
    %20 = vector.multi_reduction <add>, %19, %cst_7 [1, 2] : vector<1x8x128xf32> to vector<1xf32>
    %21 = vector.shape_cast %20 : vector<1xf32> to vector<1x1x1xf32>
    %22 = vector.extract %21[0, 0, 0] : f32 from vector<1x1x1xf32>
    %c0_8 = arith.constant 0 : index
    %c0_9 = arith.constant 0 : index
    %23 = memref.load %arg2[%c0_8, %c0_9] : memref<1x1xf32, #tpu.memory_space<smem>>
    memref.store %22, %arg2[%c0_8, %c0_9] : memref<1x1xf32, #tpu.memory_space<smem>>
    return
  }
}

</mosaic_0001>

<llo_original>
// kernel: fwd.1
$region0: #{fwd.1}
  #allocation0 [shape = 'u32[]', space=smem, size = 0x4, offset = 0x4, fixed_abs, tag = 'smem constant byte address 0x4 - core index']
  #allocation1 [shape = 'u32[144,128]{1,0:T(1,128)}', space=vmem, size = 0x12000, scoped, tag = 'internal scratch']
  %s0 = inlined_call_operand.vmem [shape: f32[8,1], index: 0, kind: input, shape index: {}]
  %s1 = inlined_call_operand.vmem [shape: f32[2,8,128], index: 1, kind: input, shape index: {}]
  %s2 = inlined_call_operand.hbm [shape: f32[1,1], index: 2, kind: output, shape index: {}]
  %s3 = sld [smem:[#allocation0]]
  $region18: #{fwd.1} parent=0
    _
  %s5 = ssub.s32 1, %s3
  %s6 = scalar_select 0, %s5, %s3
  $region1: #{fwd.1} parent=0
    #allocation2 [shape = 'u8[512]{0}', space=smem, size = 0x200, scoped, tag = 'output window, operand 0, single buffered']
    #allocation3 [shape = 's32[1]{0}', space=sflag, size = 0x4, scoped, tag = 'scoped memory for fwd.1']
    %7 = vsyncpa [#allocation3], 0
    // Predicated region
    $region2: #{fwd.1} parent=1 // pred_check
      _
    $region3: #{fwd.1} parent=1 // pred_check_branch
      %9 = sbr.rel (0) target = $region5
    $region4: #{fwd.1} parent=1 // pred_region
      _
    $region5: #{fwd.1} parent=1 // pred_fallthru
      _
    // Predicated region
    $region6: #{fwd.1} parent=1 // pred_check
      _
    $region7: #{fwd.1} parent=1 // pred_check_branch
      %11 = sbr.rel (0) target = $region9
    $region8: #{fwd.1} parent=1 // pred_region
      _
    $region9: #{fwd.1} parent=1 // pred_fallthru
      _
    %v12 = vld [vmem:[%s0] sm:$0xff]
    %14 = vset.pattern.permute.xlu0 0
    %15 = vperm.xlu0 %14, %v12
    %v16 = vpop.permute.xlu0 %15
    %v18 = vsub.f32 %v16, 1.0
    %v19 = vld [vmem:[%s1] sm:$0xff]
    %v20 = vmul.f32 %v19, %v18
    %v21 = vadd.f32 %v20, 1.0
    %v22 = vrot.slane %v21, 4
    %v23 = vmul.f32 %v21, %v22
    %v24 = vrot.slane %v23, 6
    %v25 = vmul.f32 %v23, %v24
    %v26 = vrot.slane %v25, 7
    %v27 = vmul.f32 %v25, %v26
    %s28 = scalar_lea.vmem %s1, 8
    %v29 = vld [vmem:[%s28] sm:$0xff]
    %v30 = vmul.f32 %v27, %v29
    %31 = vadd.xlane.f32.xlu0 %v30
    %v32 = vpop.xlane.xlu0 %31
    %v33 = vrot.slane %v32, 4
    %v34 = vadd.f32 %v32, %v33
    %v35 = vrot.slane %v34, 2
    %v36 = vadd.f32 %v34, %v35
    %v37 = vrot.slane %v36, 1
    %v38 = vadd.f32 %v36, %v37
    %s39 = vtos %v38
    %s40 = scalar_lea.smem [#allocation2], 0
    %41 = sst [smem:[%s40]] %s39
    // Predicated region
    $region10: #{fwd.1} parent=1 // pred_check
      _
    $region11: #{fwd.1} parent=1 // pred_check_branch
      %43 = sbr.rel (0) target = $region13
    $region12: #{fwd.1} parent=1 // pred_region
      %s45 = ssub.s32 16, 16
      %46 = vsyncadd [#allocation3], %s45
      %49 = dma.smem_to_hbm [#allocation2], 16, %s2, [#allocation3]
    $region13: #{fwd.1} parent=1 // pred_fallthru
      _
    // Predicated region
    $region14: #{fwd.1} parent=1 // pred_check
      _
    $region15: #{fwd.1} parent=1 // pred_check_branch
      %51 = sbr.rel (0) target = $region17
    $region16: #{fwd.1} parent=1 // pred_region
      %52 = dma.done [#allocation3], 16
    $region17: #{fwd.1} parent=1 // pred_fallthru
      _
    %53 = sfence
    %54 = vsyncpa [#allocation3], 1

</llo_original>
